<compile_context>
chip_gen: v6e
topology: v6e:2x2x1
jax: 0.10.0
libtpu: 0.0.40
codegen_flags: <defaults>
</compile_context>

<pallas_src>
import functools

import jax
import jax.numpy as jnp
from jax.experimental import pallas as pl
from jax.experimental.pallas import tpu as pltpu


def cbam_kernel(x_ref, w1t_ref, w2t_ref, tsp_ref, o_ref, *, Nb, HW):
    x = x_ref[...].astype(jnp.float32)            # (Nb, C, HW)
    # TODO(synk): for bf16 inputs on v6e/v7x keep the two elementwise scalings
    # and the store in bf16 (promote only reductions/MLP/sigmoid to f32);
    # the test inputs here are f32 so everything is computed in f32.

    # ---------------- Channel attention ----------------
    avg = jnp.mean(x, axis=2)                     # (Nb, C)
    mx = jnp.max(x, axis=2)                       # (Nb, C)
    stacked = jnp.concatenate([avg, mx], axis=0)  # (2*Nb, C) - fused branches

    # Fused MLP: relu(stacked @ w1t) summed over the two branches, then @ w2t.
    # Hidden dim is zero-padded to 128 lanes on host (exact, relu(0)=0).
    h = jnp.maximum(
        jnp.dot(stacked, w1t_ref[...], preferred_element_type=jnp.float32), 0.0)
    summed = h[:Nb] + h[Nb:]                      # (Nb, Hpad)
    ca = jax.nn.sigmoid(
        jnp.dot(summed, w2t_ref[...], preferred_element_type=jnp.float32))  # (Nb, C)
    ca3 = ca[:, :, None]

    # ---------------- Spatial attention ----------------
    # Channel-scaled stats: the x*ca product is consumed by the reductions
    # rather than held live across the conv; the store re-fuses the scale.
    avg_sp = jnp.mean(x * ca3, axis=1)            # (Nb, HW)
    max_sp = jnp.max(x * ca3, axis=1)             # (Nb, HW)

    # 7x7 zero-padded cross-correlation over the (mean, max) maps as a single
    # MXU matmul against the host-precomputed banded Toeplitz matrix (border
    # masks already baked into the weights).
    t = tsp_ref[...]                              # (2*HW, HW)
    conv = (jnp.dot(avg_sp, t[:HW], preferred_element_type=jnp.float32)
            + jnp.dot(max_sp, t[HW:], preferred_element_type=jnp.float32))
    sa = jax.nn.sigmoid(conv)                     # (Nb, HW)

    o_ref[...] = ((x * ca3) * sa[:, None, :]).astype(o_ref.dtype)


def _build_spatial_conv_matrix(wsp, H, W, K, PAD):
    """Banded Toeplitz matrix T of shape (2*HW, HW).

    T[c*HW + h_in*W + w_in, h_out*W + w_out] = wsp[0, c, kh, kw] for the
    in-bounds tap (kh = h_in - h_out + PAD, kw = w_in - w_out + PAD); border
    (zero-pad) masks are baked in as zeros.
    """
    HW = H * W
    h_in = jnp.arange(H).reshape(H, 1, 1, 1)
    w_in = jnp.arange(W).reshape(1, W, 1, 1)
    h_out = jnp.arange(H).reshape(1, 1, H, 1)
    w_out = jnp.arange(W).reshape(1, 1, 1, W)
    dh = h_in - h_out + PAD
    dw = w_in - w_out + PAD
    valid = (dh >= 0) & (dh < K) & (dw >= 0) & (dw < K)        # (H, W, H, W)
    taps = wsp[0][:, jnp.clip(dh, 0, K - 1), jnp.clip(dw, 0, K - 1)]  # (2,H,W,H,W)
    return jnp.where(valid[None], taps, 0.0).reshape(2 * HW, HW)


def _pick_block_n(N, C, HW, itemsize, target=8, vmem_budget=24 * 1024 * 1024):
    # Per-image footprint inside one grid step: double-buffered input + output
    # blocks (4x stored dtype) plus ~3 block-sized f32 working values.
    per_image = max(1, C * HW * (4 * itemsize + 3 * 4))
    cap = max(1, min(target, vmem_budget // per_image, N))
    if N >= 2:
        # Always leave >=2 grid steps on the "parallel" batch axis so v7x can
        # shard across its 2 TensorCores (extra step is ~0.35us on v5e/v6e).
        cap = max(1, min(cap, N // 2))
    divisors = [d for d in range(1, cap + 1) if N % d == 0]
    mult8 = [d for d in divisors if d % 8 == 0]   # full f32 sublanes preferred
    return mult8[-1] if mult8 else divisors[-1]


def cbam_pallas(x, w1, w2, wsp, *, kernel_size=7, block_n=8):
    assert kernel_size in (3, 7), "kernel size must be 3 or 7"
    N, C, H, W = x.shape
    pad = 3 if kernel_size == 7 else 1
    hidden = w1.shape[0]
    HW = H * W
    assert HW % 128 == 0, "flattened spatial dim must be a multiple of 128"
    assert HW <= 1024, "Toeplitz spatial-conv path sized for small feature maps"
    # TODO(synk): add a rolled-tap fallback path for large H*W maps.

    # Generation-aware VMEM limit (~3/4 of physical: 96 MiB on v5e/v6e,
    # 48 MiB on v7x) and block budget derived from it.
    try:
        vmem_cap = int(pltpu.get_tpu_info().vmem_capacity_bytes)
    except Exception:
        vmem_cap = 64 * 1024 * 1024
    vmem_limit = int(min((vmem_cap * 3) // 4, 96 * 1024 * 1024))
    Nb = _pick_block_n(N, C, HW, jnp.dtype(x.dtype).itemsize,
                       target=block_n, vmem_budget=vmem_limit // 2)

    x_flat = x.reshape(N, C, HW)                  # free for contiguous NCHW

    # Pad the tiny MLP weights' hidden dim to a full 128-lane tile (exact).
    Hpad = max(128, -(-hidden // 128) * 128)
    w1t = jnp.zeros((C, Hpad), jnp.float32).at[:, :hidden].set(
        jnp.asarray(w1, jnp.float32).T)           # (C, Hpad)
    w2t = jnp.zeros((Hpad, C), jnp.float32).at[:hidden, :].set(
        jnp.asarray(w2, jnp.float32).T)           # (Hpad, C)

    tsp = _build_spatial_conv_matrix(jnp.asarray(wsp, jnp.float32),
                                     H, W, kernel_size, pad)   # (2*HW, HW)

    kern = functools.partial(cbam_kernel, Nb=Nb, HW=HW)
    out_flat = pl.pallas_call(
        kern,
        out_shape=jax.ShapeDtypeStruct((N, C, HW), x.dtype),
        grid_spec=pltpu.PrefetchScalarGridSpec(
            num_scalar_prefetch=0,
            grid=(N // Nb,),
            in_specs=[
                pl.BlockSpec((Nb, C, HW), lambda n: (n, 0, 0)),
                pl.BlockSpec((C, Hpad), lambda n: (0, 0)),
                pl.BlockSpec((Hpad, C), lambda n: (0, 0)),
                pl.BlockSpec((2 * HW, HW), lambda n: (0, 0)),
            ],
            out_specs=pl.BlockSpec((Nb, C, HW), lambda n: (n, 0, 0)),
        ),
        compiler_params=pltpu.CompilerParams(
            dimension_semantics=("parallel",),
            vmem_limit_bytes=vmem_limit),
    )(x_flat, w1t, w2t, tsp)
    return out_flat.reshape(N, C, H, W)


def cbam_reference(x, w1, w2, wsp, *, pad=3):
    """Pure-JAX reference matching the PyTorch module (high-precision conv)."""
    avg = jnp.mean(x, axis=(2, 3), keepdims=True)
    mx = jnp.max(x, axis=(2, 3), keepdims=True)

    def mlp(v):
        h = jnp.einsum("oc,ncij->noij", w1, v)
        h = jnp.maximum(h, 0.0)
        return jnp.einsum("co,noij->ncij", w2, h)

    ca = jax.nn.sigmoid(mlp(avg) + mlp(mx))
    x = x * ca
    avg_sp = jnp.mean(x, axis=1, keepdims=True)
    max_sp = jnp.max(x, axis=1, keepdims=True)
    sp_in = jnp.concatenate([avg_sp, max_sp], axis=1)    # (N, 2, H, W)
    conv = jax.lax.conv_general_dilated(
        sp_in, wsp, window_strides=(1, 1), padding=((pad, pad), (pad, pad)),
        dimension_numbers=("NCHW", "OIHW", "NCHW"),
        precision=jax.lax.Precision.HIGHEST)
    sa = jax.nn.sigmoid(conv)
    return x * sa


if __name__ == "__main__":
    N, C, H, W = 2, 16, 16, 16
    ratio, kernel_size = 8, 7
    hidden = C // ratio

    key = jax.random.PRNGKey(0)
    kx, k1, k2, k3 = jax.random.split(key, 4)
    x = jax.random.normal(kx, (N, C, H, W), jnp.float32)
    # Conv2d(C, C//ratio, 1, bias=False) weight -> (hidden, C) after squeezing 1x1
    w1 = jax.random.normal(k1, (hidden, C), jnp.float32) * 0.2
    # Conv2d(C//ratio, C, 1, bias=False) weight -> (C, hidden)
    w2 = jax.random.normal(k2, (C, hidden), jnp.float32) * 0.2
    # Conv2d(2, 1, 7, padding=3, bias=False) weight -> (1, 2, 7, 7)
    wsp = jax.random.normal(k3, (1, 2, kernel_size, kernel_size), jnp.float32) * 0.1

    out = jax.block_until_ready(cbam_pallas(x, w1, w2, wsp, kernel_size=kernel_size))
    ref = jax.block_until_ready(cbam_reference(x, w1, w2, wsp, pad=3))

    assert out.shape == x.shape and out.dtype == x.dtype
    # Kernel f32 matmuls run at TPU-default MXU (bf16-pass) precision; the
    # reference conv is HIGHEST precision, so allow ~1e-3 of truncation drift.
    assert jnp.allclose(out, ref, atol=2e-3, rtol=2e-3), "mismatch vs reference"

    print("KERNEL_OK")
</pallas_src>

<mosaic_0001>
module attributes {stable_mosaic.version = 11 : i64} {
  func.func @cbam_kernel(%arg0: i32, %arg1: memref<1x16x256xf32, #tpu.memory_space<vmem>>, %arg2: memref<16x128xf32, #tpu.memory_space<vmem>>, %arg3: memref<128x16xf32, #tpu.memory_space<vmem>>, %arg4: memref<512x256xf32, #tpu.memory_space<vmem>>, %arg5: memref<1x16x256xf32, #tpu.memory_space<vmem>>) attributes {dimension_semantics = [#tpu.dimension_semantics<parallel>], iteration_bounds = array<i64: 2>, scalar_prefetch = 0 : i64, scratch_operands = 0 : i64, tpu.core_type = #tpu.core_type<tc>, window_params = [{transform_indices = @transform_0, window_bounds = array<i64: 1, 16, 256>}, {pipeline_mode = #tpu.pipeline_mode<synchronous>, transform_indices = @transform_1, window_bounds = array<i64: 16, 128>}, {pipeline_mode = #tpu.pipeline_mode<synchronous>, transform_indices = @transform_2, window_bounds = array<i64: 128, 16>}, {pipeline_mode = #tpu.pipeline_mode<synchronous>, transform_indices = @transform_3, window_bounds = array<i64: 512, 256>}, {transform_indices = @transform_4, window_bounds = array<i64: 1, 16, 256>}]} {
    %c0 = arith.constant 0 : index
    %c0_0 = arith.constant 0 : index
    %c0_1 = arith.constant 0 : index
    %0 = vector.load %arg1[%c0, %c0_0, %c0_1] : memref<1x16x256xf32, #tpu.memory_space<vmem>>, vector<1x16x256xf32>
    %cst = arith.constant dense<0.000000e+00> : vector<1x16xf32>
    %1 = vector.multi_reduction <add>, %0, %cst [2] : vector<1x16x256xf32> to vector<1x16xf32>
    %cst_2 = arith.constant 2.560000e+02 : f32
    %2 = vector.broadcast %cst_2 : f32 to vector<1x16xf32>
    %3 = arith.divf %1, %2 : vector<1x16xf32>
    %cst_3 = arith.constant dense<0xFF800000> : vector<1x16xf32>
    %4 = vector.multi_reduction <maximumf>, %0, %cst_3 [2] : vector<1x16x256xf32> to vector<1x16xf32>
    %5 = tpu.concatenate %3, %4 in 0 : vector<1x16xf32>, vector<1x16xf32> -> vector<2x16xf32>
    %c0_4 = arith.constant 0 : index
    %c0_5 = arith.constant 0 : index
    %6 = vector.load %arg2[%c0_4, %c0_5] : memref<16x128xf32, #tpu.memory_space<vmem>>, vector<16x128xf32>
    %cst_6 = arith.constant dense<0.000000e+00> : vector<2x128xf32>
    %7 = tpu.matmul %5, %6, %cst_6 {dimension_numbers = #tpu.dot_dimension_numbers<[1], [0], [0], [1], [0, 0, 1, 1], [], []>} : vector<2x16xf32>, vector<16x128xf32>, vector<2x128xf32> -> vector<2x128xf32>
    %cst_7 = arith.constant 0.000000e+00 : f32
    %8 = vector.broadcast %cst_7 : f32 to vector<2x128xf32>
    %9 = arith.maximumf %7, %8 : vector<2x128xf32>
    %10 = vector.extract_strided_slice %9 {offsets = [0, 0], sizes = [1, 128], strides = [1, 1]} : vector<2x128xf32> to vector<1x128xf32>
    %11 = vector.extract_strided_slice %9 {offsets = [1, 0], sizes = [1, 128], strides = [1, 1]} : vector<2x128xf32> to vector<1x128xf32>
    %12 = arith.addf %10, %11 : vector<1x128xf32>
    %c0_8 = arith.constant 0 : index
    %c0_9 = arith.constant 0 : index
    %13 = vector.load %arg3[%c0_8, %c0_9] : memref<128x16xf32, #tpu.memory_space<vmem>>, vector<128x16xf32>
    %cst_10 = arith.constant dense<0.000000e+00> : vector<1x16xf32>
    %14 = tpu.matmul %12, %13, %cst_10 {dimension_numbers = #tpu.dot_dimension_numbers<[1], [0], [0], [1], [0, 0, 1, 1], [], []>} : vector<1x128xf32>, vector<128x16xf32>, vector<1x16xf32> -> vector<1x16xf32>
    %15 = arith.negf %14 : vector<1x16xf32>
    %16 = math.exp %15 : vector<1x16xf32>
    %cst_11 = arith.constant 1.000000e+00 : f32
    %17 = vector.broadcast %cst_11 : f32 to vector<1x16xf32>
    %18 = arith.addf %17, %16 : vector<1x16xf32>
    %19 = arith.divf %17, %18 : vector<1x16xf32>
    %20 = vector.shape_cast %19 : vector<1x16xf32> to vector<1x16x1xf32>
    %21 = vector.broadcast %20 : vector<1x16x1xf32> to vector<1x16x256xf32>
    %22 = arith.mulf %0, %21 : vector<1x16x256xf32>
    %cst_12 = arith.constant dense<0.000000e+00> : vector<1x256xf32>
    %23 = vector.multi_reduction <add>, %22, %cst_12 [1] : vector<1x16x256xf32> to vector<1x256xf32>
    %cst_13 = arith.constant 1.600000e+01 : f32
    %24 = vector.broadcast %cst_13 : f32 to vector<1x256xf32>
    %25 = arith.divf %23, %24 : vector<1x256xf32>
    %26 = vector.broadcast %20 : vector<1x16x1xf32> to vector<1x16x256xf32>
    %27 = arith.mulf %0, %26 : vector<1x16x256xf32>
    %cst_14 = arith.constant dense<0xFF800000> : vector<1x256xf32>
    %28 = vector.multi_reduction <maximumf>, %27, %cst_14 [1] : vector<1x16x256xf32> to vector<1x256xf32>
    %c0_15 = arith.constant 0 : index
    %c0_16 = arith.constant 0 : index
    %29 = vector.load %arg4[%c0_15, %c0_16] : memref<512x256xf32, #tpu.memory_space<vmem>>, vector<512x256xf32>
    %30 = vector.extract_strided_slice %29 {offsets = [0, 0], sizes = [256, 256], strides = [1, 1]} : vector<512x256xf32> to vector<256x256xf32>
    %cst_17 = arith.constant dense<0.000000e+00> : vector<1x256xf32>
    %31 = tpu.matmul %25, %30, %cst_17 {dimension_numbers = #tpu.dot_dimension_numbers<[1], [0], [0], [1], [0, 0, 1, 1], [], []>} : vector<1x256xf32>, vector<256x256xf32>, vector<1x256xf32> -> vector<1x256xf32>
    %32 = vector.extract_strided_slice %29 {offsets = [256, 0], sizes = [256, 256], strides = [1, 1]} : vector<512x256xf32> to vector<256x256xf32>
    %cst_18 = arith.constant dense<0.000000e+00> : vector<1x256xf32>
    %33 = tpu.matmul %28, %32, %cst_18 {dimension_numbers = #tpu.dot_dimension_numbers<[1], [0], [0], [1], [0, 0, 1, 1], [], []>} : vector<1x256xf32>, vector<256x256xf32>, vector<1x256xf32> -> vector<1x256xf32>
    %34 = arith.addf %31, %33 : vector<1x256xf32>
    %35 = arith.negf %34 : vector<1x256xf32>
    %36 = math.exp %35 : vector<1x256xf32>
    %cst_19 = arith.constant 1.000000e+00 : f32
    %37 = vector.broadcast %cst_19 : f32 to vector<1x256xf32>
    %38 = arith.addf %37, %36 : vector<1x256xf32>
    %39 = arith.divf %37, %38 : vector<1x256xf32>
    %40 = vector.broadcast %20 : vector<1x16x1xf32> to vector<1x16x256xf32>
    %41 = arith.mulf %0, %40 : vector<1x16x256xf32>
    %42 = vector.shape_cast %39 : vector<1x256xf32> to vector<1x1x256xf32>
    %43 = vector.broadcast %42 : vector<1x1x256xf32> to vector<1x16x256xf32>
    %44 = arith.mulf %41, %43 : vector<1x16x256xf32>
    %c0_20 = arith.constant 0 : index
    %c0_21 = arith.constant 0 : index
    %c0_22 = arith.constant 0 : index
    %45 = vector.load %arg5[%c0_20, %c0_21, %c0_22] : memref<1x16x256xf32, #tpu.memory_space<vmem>>, vector<1x16x256xf32>
    tpu.vector_store %arg5[%c0_20, %c0_21, %c0_22], %44 {strides = array<i32>} : memref<1x16x256xf32, #tpu.memory_space<vmem>>, vector<1x16x256xf32>,
    return
  }
  func.func @transform_0(%arg0: i32) -> (i32, i32, i32) {
    %c0_i32 = arith.constant 0 : i32
    %c0_i32_0 = arith.constant 0 : i32
    %c0_i32_1 = arith.constant 0 : i32
    return %arg0, %c0_i32, %c0_i32_0 : i32, i32, i32
  }
  func.func @transform_1(%arg0: i32) -> (i32, i32) {
    %c0_i32 = arith.constant 0 : i32
    %c0_i32_0 = arith.constant 0 : i32
    %c0_i32_1 = arith.constant 0 : i32
    return %c0_i32, %c0_i32_0 : i32, i32
  }
  func.func @transform_2(%arg0: i32) -> (i32, i32) {
    %c0_i32 = arith.constant 0 : i32
    %c0_i32_0 = arith.constant 0 : i32
    %c0_i32_1 = arith.constant 0 : i32
    return %c0_i32, %c0_i32_0 : i32, i32
  }
  func.func @transform_3(%arg0: i32) -> (i32, i32) {
    %c0_i32 = arith.constant 0 : i32
    %c0_i32_0 = arith.constant 0 : i32
    %c0_i32_1 = arith.constant 0 : i32
    return %c0_i32, %c0_i32_0 : i32, i32
  }
  func.func @transform_4(%arg0: i32) -> (i32, i32, i32) {
    %c0_i32 = arith.constant 0 : i32
    %c0_i32_0 = arith.constant 0 : i32
    %c0_i32_1 = arith.constant 0 : i32
    return %arg0, %c0_i32, %c0_i32_0 : i32, i32, i32
  }
}

</mosaic_0001>

<llo_original>
// kernel: tpu_custom_call.1
$region0: #{tpu_custom_call.1}
  #allocation0 [shape = 'u32[]', space=smem, size = 0x4, offset = 0x4, fixed_abs, tag = 'smem constant byte address 0x4 - core index']
  #allocation1 [shape = 'u32[144,128]{1,0:T(1,128)}', space=vmem, size = 0x12000, scoped, tag = 'internal scratch']
  %s0 = inlined_call_operand.vmem [shape: f32[2,16,256], index: 0, kind: input, shape index: {}]
  %s1 = inlined_call_operand.vmem [shape: f32[16,128], index: 1, kind: input, shape index: {}]
  %s2 = inlined_call_operand.vmem [shape: f32[128,16], index: 2, kind: input, shape index: {}]
  %s3 = inlined_call_operand.hbm [shape: f32[512,256], index: 3, kind: input, shape index: {}]
  %s4 = inlined_call_operand.hbm [shape: f32[2,16,256], index: 4, kind: output, shape index: {}]
  %s5 = sld [smem:[#allocation0]]
  $region53: #{tpu_custom_call.1} parent=0
    _
  %s7 = ssub.s32 1, %s5
  %s8 = scalar_select 0, %s7, %s5
  $region1: #{tpu_custom_call.1} parent=0
    #allocation2 [shape = 'u8[524288]{0}', space=vmem, size = 0x80000, scoped, tag = 'input window, operand 3, single buffered']
    #allocation3 [shape = 's32[2]{0}', space=sflag, size = 0x8, scoped, tag = 'scoped memory for tpu_custom_call.1']
    #allocation4 [shape = 's32[2]{0}', space=sflag, size = 0x8, scoped, tag = 'scoped memory for tpu_custom_call.1']
    #allocation5 [shape = 'u8[32768]{0}', space=vmem, size = 0x8000, scoped, tag = 'output window, operand 0']
    %9 = vsyncpa [#allocation3], 0
    %10 = vsyncpa [#allocation4], 0
    %s11 = scalar_lea.sflag [#allocation4], 1
    %12 = vsyncpa %s11, 0
    loop: start=0, step=1, limit=4
    $region2: #{tpu_custom_call.1} parent=1 // loop_pre_header
      _
    $region3: #{tpu_custom_call.1} parent=1 // loop_header
      %s14 = sphi 0, %s18
      %p15 = scmp.ge.s32.totalorder %s14, 4
      %s24 = sphi 0, %s26
      %s27 = sphi 0, %s24
      %s28 = sphi 0, %s27
      %s44 = sphi 0, %s28
      %s48 = sphi 0, %s48
      %s50 = sphi 0, %s48
      %s51 = sphi 0, %s50
      %s65 = sphi 0, %s51
      %s69 = sphi 0, %s69
      %s71 = sphi 0, %s69
      %s72 = sphi 0, %s71
      %s86 = sphi 0, %s72
      %s90 = sphi 0, %s90
      %s92 = sphi 0, %s90
      %s93 = sphi 0, %s92
      %s107 = sphi 0, %s93
      %s113 = sphi 0, %s115
      %s116 = sphi 0, %s113
      %s117 = sphi 0, %s116
      %s133 = sphi 0, %s117
    $region4: #{tpu_custom_call.1} parent=1 // loop_header_branch
      %17 = sbr.rel (%p15) target = $region8
    $region5: #{tpu_custom_call.1} parent=1 // loop_body
      %s19 = ssub.s32 %s14, 1
      %s20 = ssub.s32 %s14, 2
      %s21 = sadd.s32 %s14, 1
      %s22 = ssub.s32 %s14, %s21
      %p23 = scmp.eq.s32.totalorder %s22, 0
      %s25 = sadd.s32 %s24, 1
      %s26 = scalar_select %p23, %s24, %s25
      %p29 = pneg %p23
      %p30 = scmp.eq.s32.totalorder %s14, 1
      %p31 = por %p29, %p30
      %p32 = scmp.ne.s32.totalorder %s24, %s27
      %p33 = scmp.eq.s32.totalorder %s14, 0
      %p34 = por %p32, %p33
      %p35 = scmp.ne.s32.totalorder %s24, %s27
      %p36 = scmp.eq.s32.totalorder %s19, 1
      %p37 = por %p35, %p36
      %p38 = scmp.ne.s32.totalorder %s27, %s28
      %p39 = scmp.eq.s32.totalorder %s19, 0
      %p40 = por %p38, %p39
      %p41 = scmp.ne.s32.totalorder %s27, %s28
      %p42 = scmp.eq.s32.totalorder %s20, 1
      %p43 = por %p41, %p42
      %p45 = scmp.ne.s32.totalorder %s28, %s44
      %p46 = scmp.eq.s32.totalorder %s20, 0
      %p47 = por %p45, %p46
      %s49 = sadd.s32 %s48, 1
      %p52 = scmp.eq.s32.totalorder %s14, 1
      %p53 = scmp.ne.s32.totalorder %s48, %s50
      %p54 = scmp.eq.s32.totalorder %s14, 0
      %p55 = por %p53, %p54
      %p56 = scmp.ne.s32.totalorder %s48, %s50
      %p57 = scmp.eq.s32.totalorder %s19, 1
      %p58 = por %p56, %p57
      %p59 = scmp.ne.s32.totalorder %s50, %s51
      %p60 = scmp.eq.s32.totalorder %s19, 0
      %p61 = por %p59, %p60
      %p62 = scmp.ne.s32.totalorder %s50, %s51
      %p63 = scmp.eq.s32.totalorder %s20, 1
      %p64 = por %p62, %p63
      %p66 = scmp.ne.s32.totalorder %s51, %s65
      %p67 = scmp.eq.s32.totalorder %s20, 0
      %p68 = por %p66, %p67
      %s70 = sadd.s32 %s69, 1
      %p73 = scmp.eq.s32.totalorder %s14, 1
      %p74 = scmp.ne.s32.totalorder %s69, %s71
      %p75 = scmp.eq.s32.totalorder %s14, 0
      %p76 = por %p74, %p75
      %p77 = scmp.ne.s32.totalorder %s69, %s71
      %p78 = scmp.eq.s32.totalorder %s19, 1
      %p79 = por %p77, %p78
      %p80 = scmp.ne.s32.totalorder %s71, %s72
      %p81 = scmp.eq.s32.totalorder %s19, 0
      %p82 = por %p80, %p81
      %p83 = scmp.ne.s32.totalorder %s71, %s72
      %p84 = scmp.eq.s32.totalorder %s20, 1
      %p85 = por %p83, %p84
      %p87 = scmp.ne.s32.totalorder %s72, %s86
      %p88 = scmp.eq.s32.totalorder %s20, 0
      %p89 = por %p87, %p88
      %s91 = sadd.s32 %s90, 1
      %p94 = scmp.eq.s32.totalorder %s14, 1
      %p95 = scmp.ne.s32.totalorder %s90, %s92
      %p96 = scmp.eq.s32.totalorder %s14, 0
      %p97 = por %p95, %p96
      %p98 = scmp.ne.s32.totalorder %s90, %s92
      %p99 = scmp.eq.s32.totalorder %s19, 1
      %p100 = por %p98, %p99
      %p101 = scmp.ne.s32.totalorder %s92, %s93
      %p102 = scmp.eq.s32.totalorder %s19, 0
      %p103 = por %p101, %p102
      %p104 = scmp.ne.s32.totalorder %s92, %s93
      %p105 = scmp.eq.s32.totalorder %s20, 1
      %p106 = por %p104, %p105
      %p108 = scmp.ne.s32.totalorder %s93, %s107
      %p109 = scmp.eq.s32.totalorder %s20, 0
      %p110 = por %p108, %p109
      %s111 = ssub.s32 %s14, %s21
      %p112 = scmp.eq.s32.totalorder %s111, 0
      %s114 = sadd.s32 %s113, 1
      %s115 = scalar_select %p112, %s113, %s114
      %p118 = pneg %p112
      %p119 = scmp.eq.s32.totalorder %s14, 1
      %p120 = por %p118, %p119
      %p121 = scmp.ne.s32.totalorder %s113, %s116
      %p122 = scmp.eq.s32.totalorder %s14, 0
      %p123 = por %p121, %p122
      %p124 = scmp.ne.s32.totalorder %s113, %s116
      %p125 = scmp.eq.s32.totalorder %s19, 1
      %p126 = por %p124, %p125
      %p127 = scmp.ne.s32.totalorder %s116, %s117
      %p128 = scmp.eq.s32.totalorder %s19, 0
      %p129 = por %p127, %p128
      %p130 = scmp.ne.s32.totalorder %s116, %s117
      %p131 = scmp.eq.s32.totalorder %s20, 1
      %p132 = por %p130, %p131
      %p134 = scmp.ne.s32.totalorder %s117, %s133
      %p135 = scmp.eq.s32.totalorder %s20, 0
      %p136 = por %p134, %p135
      %p137 = scmp.le.s32.totalorder 1, %s14
      %p138 = scmp.lt.s32.totalorder %s14, 3
      %p139 = pnand %p137, %p138
      %p140 = pneg %p139
      // Predicated region
      $region9: #{tpu_custom_call.1} parent=5 // pred_check
        _
      $region10: #{tpu_custom_call.1} parent=5 // pred_check_branch
        %142 = sbr.rel (%p139) target = $region12
      $region11: #{tpu_custom_call.1} parent=5 // pred_region
        %s143 = ssub.s32 %s14, 1
        // Predicated region
        $region13: #{tpu_custom_call.1} parent=11 // pred_check
          %p144 = pneg %p61
        $region14: #{tpu_custom_call.1} parent=11 // pred_check_branch
          %146 = sbr.rel (%p144) target = $region16
        $region15: #{tpu_custom_call.1} parent=11 // pred_region
          _
        $region16: #{tpu_custom_call.1} parent=11 // pred_fallthru
          _
        // Predicated region
        $region17: #{tpu_custom_call.1} parent=11 // pred_check
          %p147 = pneg %p82
        $region18: #{tpu_custom_call.1} parent=11 // pred_check_branch
          %149 = sbr.rel (%p147) target = $region20
        $region19: #{tpu_custom_call.1} parent=11 // pred_region
          _
        $region20: #{tpu_custom_call.1} parent=11 // pred_fallthru
          _
        // Predicated region
        $region21: #{tpu_custom_call.1} parent=11 // pred_check
          %p150 = pneg %p103
        $region22: #{tpu_custom_call.1} parent=11 // pred_check_branch
          %152 = sbr.rel (%p150) target = $region24
        $region23: #{tpu_custom_call.1} parent=11 // pred_region
          %s154 = ssub.s32 16384, 16384
          %155 = vsyncadd [#allocation3], %s154
          %s156 = sshll.u32 [#allocation2], 4
          %s157 = int_to_ptr.vmem [resolvable:$true] %s156
          %162 = dma.hbm_to_vmem [thread:$0]  %s3, 16384, %s157, [#allocation3], 256, 256, 16
        $region24: #{tpu_custom_call.1} parent=11 // pred_fallthru
          _
      $region12: #{tpu_custom_call.1} parent=5 // pred_fallthru
        _
      %p163 = scmp.lt.s32.totalorder %s14, 2
      // Predicated region
      $region25: #{tpu_custom_call.1} parent=5 // pred_check
        %p164 = pneg %p163
      $region26: #{tpu_custom_call.1} parent=5 // pred_check_branch
        %166 = sbr.rel (%p164) target = $region28
      $region27: #{tpu_custom_call.1} parent=5 // pred_region
        // Predicated region
        $region29: #{tpu_custom_call.1} parent=27 // pred_check
          %p167 = pneg %p34
        $region30: #{tpu_custom_call.1} parent=27 // pred_check_branch
          %169 = sbr.rel (%p167) target = $region32
        $region31: #{tpu_custom_call.1} parent=27 // pred_region
          %p170 = scmp.lt.s32.totalorder %s14, 1
          %s171 = scalar_select %p170, %s14, 1
          %s172 = smul.addr %s171, 4
          %s173 = smul.addr %s172, 8
          %s174 = scalar_lea.vmem %s0, %s173
        $region32: #{tpu_custom_call.1} parent=27 // pred_fallthru
          _
      $region28: #{tpu_custom_call.1} parent=5 // pred_fallthru
        _
      %p175 = scmp.le.s32.totalorder 1, %s14
      %p176 = scmp.lt.s32.totalorder %s14, 3
      %p177 = pnand %p175, %p176
      %p178 = pneg %p177
      // Predicated region
      $region33: #{tpu_custom_call.1} parent=5 // pred_check
        _
      $region34: #{tpu_custom_call.1} parent=5 // pred_check_branch
        %180 = sbr.rel (%p177) target = $region36
      $region35: #{tpu_custom_call.1} parent=5 // pred_region
        %s181 = ssub.s32 %s14, 1
        // Predicated region
        $region37: #{tpu_custom_call.1} parent=35 // pred_check
          %p182 = pneg %p103
        $region38: #{tpu_custom_call.1} parent=35 // pred_check_branch
          %184 = sbr.rel (%p182) target = $region40
        $region39: #{tpu_custom_call.1} parent=35 // pred_region
          %185 = dma.done [#allocation3], 16384
        $region40: #{tpu_custom_call.1} parent=35 // pred_fallthru
          _
        %p186 = scmp.lt.s32.totalorder %s19, 1
        %s187 = scalar_select %p186, %s19, 1
        %s188 = smul.addr %s187, 4
        %s189 = smul.addr %s188, 8
        %s190 = scalar_lea.vmem %s0, %s189
        %p191 = pneg %p40
        %p192 = pneg %p37
        %p193 = pneg %p61
        %p194 = pneg %p58
        %p195 = pneg %p82
        %p196 = pneg %p79
        %p197 = pneg %p103
        %p198 = pneg %p100
        %p199 = pneg %p129
        %p200 = pneg %p126
        %s201 = sand.u32 %s116, 1
        %s202 = scalar_lea.sflag [#allocation4], %s201
        %s203 = sand.u32 %s116, 1
        %s204 = smul.addr %s203, 32
        %s205 = scalar_lea.vmem [#allocation5], %s204
        %p206 = scmp.lt.s32.totalorder %s19, 1
        %s207 = scalar_select %p206, %s19, 1
        %s208 = smul.addr %s207, 4
        %s209 = smul.addr %s208, 8
        %s210 = scalar_lea.vmem %s0, %s209
        %v211 = vld [vmem:[%s210] sm:$0xff]
        %v212 = vld [vmem:[%s210 + $0x8] sm:$0xff]
        %v213 = vld [vmem:[%s210 + $0x10] sm:$0xff]
        %v214 = vld [vmem:[%s210 + $0x18] sm:$0xff]
        %v215 = vadd.f32 %v211, %v212
        %216 = vadd.xlane.f32.xlu0 %v215
        %v217 = vpop.xlane.xlu0 %216
        %v218 = vadd.f32 %v213, %v214
        %219 = vadd.xlane.f32.xlu0 %v218
        %v220 = vpop.xlane.xlu0 %219
        %v221 = vrcp.pop 256.0
        %v222 = vmul.f32 %v217, %v221
        %v223 = vmul.f32 %v220, %v221
        %v224 = vmax.f32 %v211, %v212
        %225 = vmax.xlane.f32.xlu0 %v224
        %v226 = vpop.xlane.xlu0 %225
        %v227 = vmax.f32 %v213, %v214
        %228 = vmax.xlane.f32.xlu0 %v227
        %v229 = vpop.xlane.xlu0 %228
        %v232 = vlaneseq
        %v233 = vand.u32 %v232, 127
        %v234 = vlaneseq
        %v235 = vshrl.u32 %v234, 7
        %v236 = vsub.s32 %v233, %v235
        %v237 = vrot.slane %v222, %v236
        %v238 = vadd.s32 %v233, 4294967288
        %v239 = vlaneseq
        %v240 = vshrl.u32 %v239, 7
        %v241 = vsub.s32 %v238, %v240
        %v242 = vrot.slane %v223, %v241
        %vm243 = vcmask 130112
        %v244 = vsel %vm243, %v242, %v237
        %v248 = vlaneseq
        %v249 = vshrl.u32 %v248, 7
        %v250 = vsub.s32 %v233, %v249
        %v251 = vrot.slane %v226, %v250
        %v252 = vlaneseq
        %v253 = vshrl.u32 %v252, 7
        %v254 = vsub.s32 %v238, %v253
        %v255 = vrot.slane %v229, %v254
        %v256 = vsel %vm243, %v255, %v251
        %vm258 = vcmask 1040384
        %v259 = vsel %vm258, %v244, %v256
        %v260 = vld [vmem:[%s1] sm:$0xff]
        %v261 = vld [vmem:[%s1 + $0x8] sm:$0xff]
        %vm262 = vcmask 130048
        %v264 = vsel %vm262, %v259, 0
        %266 = vmatprep.subr.mxu0 0.0
        %267 = vmatpush1.msra.mxu0 0.0
        %268 = vmatprep.subr.mxu0 0.0
        %269 = vmatpush1.msra.mxu0 0.0
        %270 = vmatprep.subr.mxu0 0.0
        %271 = vmatpush1.msra.mxu0 0.0
        %272 = vmatprep.subr.mxu0 0.0
        %273 = vmatpush1.msra.mxu0 0.0
        %274 = vmatprep.subr.mxu0 0.0
        %275 = vmatpush1.msra.mxu0 0.0
        %276 = vmatprep.subr.mxu0 0.0
        %277 = vmatpush1.msra.mxu0 0.0
        %278 = vmatprep.subr.mxu0 0.0
        %279 = vmatpush1.msra.mxu0 0.0
        %280 = vmatprep.subr.mxu0 0.0
        %281 = vmatpush1.msra.mxu0 0.0
        %282 = vmatprep.subr.mxu0 0.0
        %283 = vmatpush1.msra.mxu0 0.0
        %284 = vmatprep.subr.mxu0 0.0
        %285 = vmatpush1.msra.mxu0 0.0
        %286 = vmatprep.subr.mxu0 0.0
        %287 = vmatpush1.msra.mxu0 0.0
        %288 = vmatprep.subr.mxu0 0.0
        %289 = vmatpush1.msra.mxu0 0.0
        %290 = vmatprep.subr.mxu0 0.0
        %291 = vmatpush1.msra.mxu0 0.0
        %292 = vmatprep.subr.mxu0 0.0
        %293 = vmatpush1.msra.mxu0 0.0
        %294 = vmatprep.subr.mxu0 0.0
        %295 = vmatpush1.msra.mxu0 %v261
        %296 = vmatprep.subr.mxu0 0.0
        %297 = vmatpush1.msra.mxu0 %v260
        %298 = vmatprep.subr.mxu0 0.0
        %299 = vmatpush2.msra.mxu0 0.0
        %300 = vmatprep.subr.mxu0 0.0
        %301 = vmatpush2.msra.mxu0 0.0
        %302 = vmatprep.subr.mxu0 0.0
        %303 = vmatpush2.msra.mxu0 0.0
        %304 = vmatprep.subr.mxu0 0.0
        %305 = vmatpush2.msra.mxu0 0.0
        %306 = vmatprep.subr.mxu0 0.0
        %307 = vmatpush2.msra.mxu0 0.0
        %308 = vmatprep.subr.mxu0 0.0
        %309 = vmatpush2.msra.mxu0 0.0
        %310 = vmatprep.subr.mxu0 0.0
        %311 = vmatpush2.msra.mxu0 0.0
        %312 = vmatprep.subr.mxu0 0.0
        %313 = vmatpush2.msra.mxu0 0.0
        %314 = vmatprep.subr.mxu0 0.0
        %315 = vmatpush2.msra.mxu0 0.0
        %316 = vmatprep.subr.mxu0 0.0
        %317 = vmatpush2.msra.mxu0 0.0
        %318 = vmatprep.subr.mxu0 0.0
        %319 = vmatpush2.msra.mxu0 0.0
        %320 = vmatprep.subr.mxu0 0.0
        %321 = vmatpush2.msra.mxu0 0.0
        %322 = vmatprep.subr.mxu0 0.0
        %323 = vmatpush2.msra.mxu0 0.0
        %324 = vmatprep.subr.mxu0 0.0
        %325 = vmatpush2.msra.mxu0 0.0
        %326 = vmatprep.subr.mxu0 0.0
        %327 = vmatpush2.msra.mxu0 0.0
        %328 = vmatprep.subr.mxu0 0.0
        %329 = vmatpush2.msra.mxu0 0.0
        %330 = vmatprep.mubr.f32.mxu0 0.0
        %331 = vmatmul.mubr.f32.gmra.mxu0 %v264
        %v332 = vpop.f32.mrf.mxu0
        %v333 = vadd.f32 0.0, %v332
        %v334 = vpop.f32.mrf.mxu0
        %335 = vdwg.mxu0
        %v336 = vmax.f32 %v333, 0.0
        %v338 = vrot.slane %v336, 1
        %v340 = vadd.f32 %v336, %v338
        %v341 = vld [vmem:[%s2] sm:$0xff]
        %v342 = vld [vmem:[%s2 + $0x8] sm:$0xff]
        %v343 = vld [vmem:[%s2 + $0x10] sm:$0xff]
        %v344 = vld [vmem:[%s2 + $0x18] sm:$0xff]
        %v345 = vld [vmem:[%s2 + $0x20] sm:$0xff]
        %v346 = vld [vmem:[%s2 + $0x28] sm:$0xff]
        %v347 = vld [vmem:[%s2 + $0x30] sm:$0xff]
        %v348 = vld [vmem:[%s2 + $0x38] sm:$0xff]
        %v349 = vld [vmem:[%s2 + $0x40] sm:$0xff]
        %v350 = vld [vmem:[%s2 + $0x48] sm:$0xff]
        %v351 = vld [vmem:[%s2 + $0x50] sm:$0xff]
        %v352 = vld [vmem:[%s2 + $0x58] sm:$0xff]
        %v353 = vld [vmem:[%s2 + $0x60] sm:$0xff]
        %v354 = vld [vmem:[%s2 + $0x68] sm:$0xff]
        %v355 = vld [vmem:[%s2 + $0x70] sm:$0xff]
        %v356 = vld [vmem:[%s2 + $0x78] sm:$0xff]
        %357 = vmatprep.subr.mxu0 0.0
        %358 = vmatpush1.msra.mxu0 %v356
        %359 = vmatprep.subr.mxu0 0.0
        %360 = vmatpush1.msra.mxu0 %v355
        %361 = vmatprep.subr.mxu0 0.0
        %362 = vmatpush1.msra.mxu0 %v354
        %363 = vmatprep.subr.mxu0 0.0
        %364 = vmatpush1.msra.mxu0 %v353
        %365 = vmatprep.subr.mxu0 0.0
        %366 = vmatpush1.msra.mxu0 %v352
        %367 = vmatprep.subr.mxu0 0.0
        %368 = vmatpush1.msra.mxu0 %v351
        %369 = vmatprep.subr.mxu0 0.0
        %370 = vmatpush1.msra.mxu0 %v350
        %371 = vmatprep.subr.mxu0 0.0
        %372 = vmatpush1.msra.mxu0 %v349
        %373 = vmatprep.subr.mxu0 0.0
        %374 = vmatpush1.msra.mxu0 %v348
        %375 = vmatprep.subr.mxu0 0.0
        %376 = vmatpush1.msra.mxu0 %v347
        %377 = vmatprep.subr.mxu0 0.0
        %378 = vmatpush1.msra.mxu0 %v346
        %379 = vmatprep.subr.mxu0 0.0
        %380 = vmatpush1.msra.mxu0 %v345
        %381 = vmatprep.subr.mxu0 0.0
        %382 = vmatpush1.msra.mxu0 %v344
        %383 = vmatprep.subr.mxu0 0.0
        %384 = vmatpush1.msra.mxu0 %v343
        %385 = vmatprep.subr.mxu0 0.0
        %386 = vmatpush1.msra.mxu0 %v342
        %387 = vmatprep.subr.mxu0 0.0
        %388 = vmatpush1.msra.mxu0 %v341
        %389 = vmatprep.subr.mxu0 0.0
        %390 = vmatpush2.msra.mxu0 0.0
        %391 = vmatprep.subr.mxu0 0.0
        %392 = vmatpush2.msra.mxu0 0.0
        %393 = vmatprep.subr.mxu0 0.0
        %394 = vmatpush2.msra.mxu0 0.0
        %395 = vmatprep.subr.mxu0 0.0
        %396 = vmatpush2.msra.mxu0 0.0
        %397 = vmatprep.subr.mxu0 0.0
        %398 = vmatpush2.msra.mxu0 0.0
        %399 = vmatprep.subr.mxu0 0.0
        %400 = vmatpush2.msra.mxu0 0.0
        %401 = vmatprep.subr.mxu0 0.0
        %402 = vmatpush2.msra.mxu0 0.0
        %403 = vmatprep.subr.mxu0 0.0
        %404 = vmatpush2.msra.mxu0 0.0
        %405 = vmatprep.subr.mxu0 0.0
        %406 = vmatpush2.msra.mxu0 0.0
        %407 = vmatprep.subr.mxu0 0.0
        %408 = vmatpush2.msra.mxu0 0.0
        %409 = vmatprep.subr.mxu0 0.0
        %410 = vmatpush2.msra.mxu0 0.0
        %411 = vmatprep.subr.mxu0 0.0
        %412 = vmatpush2.msra.mxu0 0.0
        %413 = vmatprep.subr.mxu0 0.0
        %414 = vmatpush2.msra.mxu0 0.0
        %415 = vmatprep.subr.mxu0 0.0
        %416 = vmatpush2.msra.mxu0 0.0
        %417 = vmatprep.subr.mxu0 0.0
        %418 = vmatpush2.msra.mxu0 0.0
        %419 = vmatprep.subr.mxu0 0.0
        %420 = vmatpush2.msra.mxu0 0.0
        %421 = vmatprep.mubr.f32.mxu0 0.0
        %422 = vmatmul.mubr.f32.gmra.mxu0 %v340
        %v423 = vpop.f32.mrf.mxu0
        %v424 = vadd.f32 0.0, %v423
        %v425 = vpop.f32.mrf.mxu0
        %426 = vdwg.mxu0
        %v427 = vxor.u32 %v424, 2147483648
        %v428 = vmul.f32 %v427, 1.442695
        %v429 = vpow.pop %v428
        %v430 = vadd.f32 %v429, 1.0
        %v431 = vrcp.pop %v430
        %v432 = vmul.f32 1.0, %v431
        %v433 = vlaneseq
        %v434 = vshrl.u32 %v433, 7
        %v435 = vsub.s32 0, %v434
        %v436 = vrot.slane %v432, %v435
        %438 = vbcast.lane.b32.xlu0 %v436, 256
        %v439 = vpop.permute.xlu0 %438
        %s441 = sor.u32 256, 8
        %442 = vbcast.lane.b32.xlu0 %v436, %s441
        %v443 = vpop.permute.xlu0 %442
        %v444 = vmul.f32 %v211, %v439
        %v445 = vmul.f32 %v212, %v439
        %v446 = vmul.f32 %v213, %v443
        %v447 = vmul.f32 %v214, %v443
        %v448 = vadd.f32 %v444, %v446
        %v449 = vrot.slane %v448, 4
        %v450 = vadd.f32 %v448, %v449
        %v451 = vrot.slane %v450, 2
        %v452 = vadd.f32 %v450, %v451
        %v453 = vrot.slane %v452, 1
        %v454 = vadd.f32 %v452, %v453
        %v455 = vadd.f32 %v445, %v447
        %v456 = vrot.slane %v455, 4
        %v457 = vadd.f32 %v455, %v456
        %v458 = vrot.slane %v457, 2
        %v459 = vadd.f32 %v457, %v458
        %v460 = vrot.slane %v459, 1
        %v461 = vadd.f32 %v459, %v460
        %v462 = vrcp.pop 16.0
        %v463 = vmul.f32 %v454, %v462
        %v464 = vmul.f32 %v461, %v462
        %v465 = vmax.f32 %v444, %v446
        %v466 = vrot.slane %v465, 4
        %v467 = vmax.f32 %v465, %v466
        %v468 = vrot.slane %v467, 2
        %v469 = vmax.f32 %v467, %v468
        %v470 = vrot.slane %v469, 1
        %v471 = vmax.f32 %v469, %v470
        %v472 = vmax.f32 %v445, %v447
        %v473 = vrot.slane %v472, 4
        %v474 = vmax.f32 %v472, %v473
        %v475 = vrot.slane %v474, 2
        %v476 = vmax.f32 %v474, %v475
        %v477 = vrot.slane %v476, 1
        %v478 = vmax.f32 %v476, %v477
        %v479 = vld [vmem:[#allocation2] sm:$0xff]
        %v480 = vld [vmem:[#allocation2 + $0x8] sm:$0xff]
        %v481 = vld [vmem:[#allocation2 + $0x10] sm:$0xff]
        %v482 = vld [vmem:[#allocation2 + $0x18] sm:$0xff]
        %v483 = vld [vmem:[#allocation2 + $0x20] sm:$0xff]
        %v484 = vld [vmem:[#allocation2 + $0x28] sm:$0xff]
        %v485 = vld [vmem:[#allocation2 + $0x30] sm:$0xff]
        %v486 = vld [vmem:[#allocation2 + $0x38] sm:$0xff]
        %v487 = vld [vmem:[#allocation2 + $0x40] sm:$0xff]
        %v488 = vld [vmem:[#allocation2 + $0x48] sm:$0xff]
        %v489 = vld [vmem:[#allocation2 + $0x50] sm:$0xff]
        %v490 = vld [vmem:[#allocation2 + $0x58] sm:$0xff]
        %v491 = vld [vmem:[#allocation2 + $0x60] sm:$0xff]
        %v492 = vld [vmem:[#allocation2 + $0x68] sm:$0xff]
        %v493 = vld [vmem:[#allocation2 + $0x70] sm:$0xff]
        %v494 = vld [vmem:[#allocation2 + $0x78] sm:$0xff]
        %v495 = vld [vmem:[#allocation2 + $0x80] sm:$0xff]
        %v496 = vld [vmem:[#allocation2 + $0x88] sm:$0xff]
        %v497 = vld [vmem:[#allocation2 + $0x90] sm:$0xff]
        %v498 = vld [vmem:[#allocation2 + $0x98] sm:$0xff]
        %v499 = vld [vmem:[#allocation2 + $0xa0] sm:$0xff]
        %v500 = vld [vmem:[#allocation2 + $0xa8] sm:$0xff]
        %v501 = vld [vmem:[#allocation2 + $0xb0] sm:$0xff]
        %v502 = vld [vmem:[#allocation2 + $0xb8] sm:$0xff]
        %v503 = vld [vmem:[#allocation2 + $0xc0] sm:$0xff]
        %v504 = vld [vmem:[#allocation2 + $0xc8] sm:$0xff]
        %v505 = vld [vmem:[#allocation2 + $0xd0] sm:$0xff]
        %v506 = vld [vmem:[#allocation2 + $0xd8] sm:$0xff]
        %v507 = vld [vmem:[#allocation2 + $0xe0] sm:$0xff]
        %v508 = vld [vmem:[#allocation2 + $0xe8] sm:$0xff]
        %v509 = vld [vmem:[#allocation2 + $0xf0] sm:$0xff]
        %v510 = vld [vmem:[#allocation2 + $0xf8] sm:$0xff]
        %v511 = vld [vmem:[#allocation2 + $0x100] sm:$0xff]
        %v512 = vld [vmem:[#allocation2 + $0x108] sm:$0xff]
        %v513 = vld [vmem:[#allocation2 + $0x110] sm:$0xff]
        %v514 = vld [vmem:[#allocation2 + $0x118] sm:$0xff]
        %v515 = vld [vmem:[#allocation2 + $0x120] sm:$0xff]
        %v516 = vld [vmem:[#allocation2 + $0x128] sm:$0xff]
        %v517 = vld [vmem:[#allocation2 + $0x130] sm:$0xff]
        %v518 = vld [vmem:[#allocation2 + $0x138] sm:$0xff]
        %v519 = vld [vmem:[#allocation2 + $0x140] sm:$0xff]
        %v520 = vld [vmem:[#allocation2 + $0x148] sm:$0xff]
        %v521 = vld [vmem:[#allocation2 + $0x150] sm:$0xff]
        %v522 = vld [vmem:[#allocation2 + $0x158] sm:$0xff]
        %v523 = vld [vmem:[#allocation2 + $0x160] sm:$0xff]
        %v524 = vld [vmem:[#allocation2 + $0x168] sm:$0xff]
        %v525 = vld [vmem:[#allocation2 + $0x170] sm:$0xff]
        %v526 = vld [vmem:[#allocation2 + $0x178] sm:$0xff]
        %v527 = vld [vmem:[#allocation2 + $0x180] sm:$0xff]
        %v528 = vld [vmem:[#allocation2 + $0x188] sm:$0xff]
        %v529 = vld [vmem:[#allocation2 + $0x190] sm:$0xff]
        %v530 = vld [vmem:[#allocation2 + $0x198] sm:$0xff]
        %v531 = vld [vmem:[#allocation2 + $0x1a0] sm:$0xff]
        %v532 = vld [vmem:[#allocation2 + $0x1a8] sm:$0xff]
        %v533 = vld [vmem:[#allocation2 + $0x1b0] sm:$0xff]
        %v534 = vld [vmem:[#allocation2 + $0x1b8] sm:$0xff]
        %v535 = vld [vmem:[#allocation2 + $0x1c0] sm:$0xff]
        %v536 = vld [vmem:[#allocation2 + $0x1c8] sm:$0xff]
        %v537 = vld [vmem:[#allocation2 + $0x1d0] sm:$0xff]
        %v538 = vld [vmem:[#allocation2 + $0x1d8] sm:$0xff]
        %v539 = vld [vmem:[#allocation2 + $0x1e0] sm:$0xff]
        %v540 = vld [vmem:[#allocation2 + $0x1e8] sm:$0xff]
        %v541 = vld [vmem:[#allocation2 + $0x1f0] sm:$0xff]
        %v542 = vld [vmem:[#allocation2 + $0x1f8] sm:$0xff]
        %v543 = vld [vmem:[#allocation2 + $0x200] sm:$0xff]
        %v544 = vld [vmem:[#allocation2 + $0x208] sm:$0xff]
        %v545 = vld [vmem:[#allocation2 + $0x210] sm:$0xff]
        %v546 = vld [vmem:[#allocation2 + $0x218] sm:$0xff]
        %v547 = vld [vmem:[#allocation2 + $0x220] sm:$0xff]
        %v548 = vld [vmem:[#allocation2 + $0x228] sm:$0xff]
        %v549 = vld [vmem:[#allocation2 + $0x230] sm:$0xff]
        %v550 = vld [vmem:[#allocation2 + $0x238] sm:$0xff]
        %v551 = vld [vmem:[#allocation2 + $0x240] sm:$0xff]
        %v552 = vld [vmem:[#allocation2 + $0x248] sm:$0xff]
        %v553 = vld [vmem:[#allocation2 + $0x250] sm:$0xff]
        %v554 = vld [vmem:[#allocation2 + $0x258] sm:$0xff]
        %v555 = vld [vmem:[#allocation2 + $0x260] sm:$0xff]
        %v556 = vld [vmem:[#allocation2 + $0x268] sm:$0xff]
        %v557 = vld [vmem:[#allocation2 + $0x270] sm:$0xff]
        %v558 = vld [vmem:[#allocation2 + $0x278] sm:$0xff]
        %v559 = vld [vmem:[#allocation2 + $0x280] sm:$0xff]
        %v560 = vld [vmem:[#allocation2 + $0x288] sm:$0xff]
        %v561 = vld [vmem:[#allocation2 + $0x290] sm:$0xff]
        %v562 = vld [vmem:[#allocation2 + $0x298] sm:$0xff]
        %v563 = vld [vmem:[#allocation2 + $0x2a0] sm:$0xff]
        %v564 = vld [vmem:[#allocation2 + $0x2a8] sm:$0xff]
        %v565 = vld [vmem:[#allocation2 + $0x2b0] sm:$0xff]
        %v566 = vld [vmem:[#allocation2 + $0x2b8] sm:$0xff]
        %v567 = vld [vmem:[#allocation2 + $0x2c0] sm:$0xff]
        %v568 = vld [vmem:[#allocation2 + $0x2c8] sm:$0xff]
        %v569 = vld [vmem:[#allocation2 + $0x2d0] sm:$0xff]
        %v570 = vld [vmem:[#allocation2 + $0x2d8] sm:$0xff]
        %v571 = vld [vmem:[#allocation2 + $0x2e0] sm:$0xff]
        %v572 = vld [vmem:[#allocation2 + $0x2e8] sm:$0xff]
        %v573 = vld [vmem:[#allocation2 + $0x2f0] sm:$0xff]
        %v574 = vld [vmem:[#allocation2 + $0x2f8] sm:$0xff]
        %v575 = vld [vmem:[#allocation2 + $0x300] sm:$0xff]
        %v576 = vld [vmem:[#allocation2 + $0x308] sm:$0xff]
        %v577 = vld [vmem:[#allocation2 + $0x310] sm:$0xff]
        %v578 = vld [vmem:[#allocation2 + $0x318] sm:$0xff]
        %v579 = vld [vmem:[#allocation2 + $0x320] sm:$0xff]
        %v580 = vld [vmem:[#allocation2 + $0x328] sm:$0xff]
        %v581 = vld [vmem:[#allocation2 + $0x330] sm:$0xff]
        %v582 = vld [vmem:[#allocation2 + $0x338] sm:$0xff]
        %v583 = vld [vmem:[#allocation2 + $0x340] sm:$0xff]
        %v584 = vld [vmem:[#allocation2 + $0x348] sm:$0xff]
        %v585 = vld [vmem:[#allocation2 + $0x350] sm:$0xff]
        %v586 = vld [vmem:[#allocation2 + $0x358] sm:$0xff]
        %v587 = vld [vmem:[#allocation2 + $0x360] sm:$0xff]
        %v588 = vld [vmem:[#allocation2 + $0x368] sm:$0xff]
        %v589 = vld [vmem:[#allocation2 + $0x370] sm:$0xff]
        %v590 = vld [vmem:[#allocation2 + $0x378] sm:$0xff]
        %v591 = vld [vmem:[#allocation2 + $0x380] sm:$0xff]
        %v592 = vld [vmem:[#allocation2 + $0x388] sm:$0xff]
        %v593 = vld [vmem:[#allocation2 + $0x390] sm:$0xff]
        %v594 = vld [vmem:[#allocation2 + $0x398] sm:$0xff]
        %v595 = vld [vmem:[#allocation2 + $0x3a0] sm:$0xff]
        %v596 = vld [vmem:[#allocation2 + $0x3a8] sm:$0xff]
        %v597 = vld [vmem:[#allocation2 + $0x3b0] sm:$0xff]
        %v598 = vld [vmem:[#allocation2 + $0x3b8] sm:$0xff]
        %v599 = vld [vmem:[#allocation2 + $0x3c0] sm:$0xff]
        %v600 = vld [vmem:[#allocation2 + $0x3c8] sm:$0xff]
        %v601 = vld [vmem:[#allocation2 + $0x3d0] sm:$0xff]
        %v602 = vld [vmem:[#allocation2 + $0x3d8] sm:$0xff]
        %v603 = vld [vmem:[#allocation2 + $0x3e0] sm:$0xff]
        %v604 = vld [vmem:[#allocation2 + $0x3e8] sm:$0xff]
        %v605 = vld [vmem:[#allocation2 + $0x3f0] sm:$0xff]
        %v606 = vld [vmem:[#allocation2 + $0x3f8] sm:$0xff]
        %607 = vmatprep.subr.mxu0 %v574
        %608 = vmatpush1.msra.mxu0 %v573
        %609 = vmatprep.subr.mxu0 %v572
        %610 = vmatpush1.msra.mxu0 %v571
        %611 = vmatprep.subr.mxu0 %v570
        %612 = vmatpush1.msra.mxu0 %v569
        %613 = vmatprep.subr.mxu0 %v568
        %614 = vmatpush1.msra.mxu0 %v567
        %615 = vmatprep.subr.mxu0 %v566
        %616 = vmatpush1.msra.mxu0 %v565
        %617 = vmatprep.subr.mxu0 %v564
        %618 = vmatpush1.msra.mxu0 %v563
        %619 = vmatprep.subr.mxu0 %v562
        %620 = vmatpush1.msra.mxu0 %v561
        %621 = vmatprep.subr.mxu0 %v560
        %622 = vmatpush1.msra.mxu0 %v559
        %623 = vmatprep.subr.mxu0 %v558
        %624 = vmatpush1.msra.mxu0 %v557
        %625 = vmatprep.subr.mxu0 %v556
        %626 = vmatpush1.msra.mxu0 %v555
        %627 = vmatprep.subr.mxu0 %v554
        %628 = vmatpush1.msra.mxu0 %v553
        %629 = vmatprep.subr.mxu0 %v552
        %630 = vmatpush1.msra.mxu0 %v551
        %631 = vmatprep.subr.mxu0 %v550
        %632 = vmatpush1.msra.mxu0 %v549
        %633 = vmatprep.subr.mxu0 %v548
        %634 = vmatpush1.msra.mxu0 %v547
        %635 = vmatprep.subr.mxu0 %v546
        %636 = vmatpush1.msra.mxu0 %v545
        %637 = vmatprep.subr.mxu0 %v544
        %638 = vmatpush1.msra.mxu0 %v543
        %639 = vmatprep.subr.mxu0 %v606
        %640 = vmatpush2.msra.mxu0 %v605
        %641 = vmatprep.subr.mxu0 %v604
        %642 = vmatpush2.msra.mxu0 %v603
        %643 = vmatprep.subr.mxu0 %v602
        %644 = vmatpush2.msra.mxu0 %v601
        %645 = vmatprep.subr.mxu0 %v600
        %646 = vmatpush2.msra.mxu0 %v599
        %647 = vmatprep.subr.mxu0 %v598
        %648 = vmatpush2.msra.mxu0 %v597
        %649 = vmatprep.subr.mxu0 %v596
        %650 = vmatpush2.msra.mxu0 %v595
        %651 = vmatprep.subr.mxu0 %v594
        %652 = vmatpush2.msra.mxu0 %v593
        %653 = vmatprep.subr.mxu0 %v592
        %654 = vmatpush2.msra.mxu0 %v591
        %655 = vmatprep.subr.mxu0 %v590
        %656 = vmatpush2.msra.mxu0 %v589
        %657 = vmatprep.subr.mxu0 %v588
        %658 = vmatpush2.msra.mxu0 %v587
        %659 = vmatprep.subr.mxu0 %v586
        %660 = vmatpush2.msra.mxu0 %v585
        %661 = vmatprep.subr.mxu0 %v584
        %662 = vmatpush2.msra.mxu0 %v583
        %663 = vmatprep.subr.mxu0 %v582
        %664 = vmatpush2.msra.mxu0 %v581
        %665 = vmatprep.subr.mxu0 %v580
        %666 = vmatpush2.msra.mxu0 %v579
        %667 = vmatprep.subr.mxu0 %v578
        %668 = vmatpush2.msra.mxu0 %v577
        %669 = vmatprep.subr.mxu0 %v576
        %670 = vmatpush2.msra.mxu0 %v575
        %671 = vmatprep.mubr.f32.mxu0 %v478
        %672 = vmatmul.mubr.f32.gmra.mxu0 %v471
        %v673 = vpop.f32.mrf.mxu0
        %v674 = vadd.f32 0.0, %v673
        %v675 = vpop.f32.mrf.mxu0
        %v676 = vadd.f32 0.0, %v675
        %677 = vdwg.mxu0
        %678 = vmatprep.subr.mxu0 %v510
        %679 = vmatpush1.msra.mxu0 %v509
        %680 = vmatprep.subr.mxu0 %v508
        %681 = vmatpush1.msra.mxu0 %v507
        %682 = vmatprep.subr.mxu0 %v506
        %683 = vmatpush1.msra.mxu0 %v505
        %684 = vmatprep.subr.mxu0 %v504
        %685 = vmatpush1.msra.mxu0 %v503
        %686 = vmatprep.subr.mxu0 %v502
        %687 = vmatpush1.msra.mxu0 %v501
        %688 = vmatprep.subr.mxu0 %v500
        %689 = vmatpush1.msra.mxu0 %v499
        %690 = vmatprep.subr.mxu0 %v498
        %691 = vmatpush1.msra.mxu0 %v497
        %692 = vmatprep.subr.mxu0 %v496
        %693 = vmatpush1.msra.mxu0 %v495
        %694 = vmatprep.subr.mxu0 %v494
        %695 = vmatpush1.msra.mxu0 %v493
        %696 = vmatprep.subr.mxu0 %v492
        %697 = vmatpush1.msra.mxu0 %v491
        %698 = vmatprep.subr.mxu0 %v490
        %699 = vmatpush1.msra.mxu0 %v489
        %700 = vmatprep.subr.mxu0 %v488
        %701 = vmatpush1.msra.mxu0 %v487
        %702 = vmatprep.subr.mxu0 %v486
        %703 = vmatpush1.msra.mxu0 %v485
        %704 = vmatprep.subr.mxu0 %v484
        %705 = vmatpush1.msra.mxu0 %v483
        %706 = vmatprep.subr.mxu0 %v482
        %707 = vmatpush1.msra.mxu0 %v481
        %708 = vmatprep.subr.mxu0 %v480
        %709 = vmatpush1.msra.mxu0 %v479
        %710 = vmatprep.subr.mxu0 %v542
        %711 = vmatpush2.msra.mxu0 %v541
        %712 = vmatprep.subr.mxu0 %v540
        %713 = vmatpush2.msra.mxu0 %v539
        %714 = vmatprep.subr.mxu0 %v538
        %715 = vmatpush2.msra.mxu0 %v537
        %716 = vmatprep.subr.mxu0 %v536
        %717 = vmatpush2.msra.mxu0 %v535
        %718 = vmatprep.subr.mxu0 %v534
        %719 = vmatpush2.msra.mxu0 %v533
        %720 = vmatprep.subr.mxu0 %v532
        %721 = vmatpush2.msra.mxu0 %v531
        %722 = vmatprep.subr.mxu0 %v530
        %723 = vmatpush2.msra.mxu0 %v529
        %724 = vmatprep.subr.mxu0 %v528
        %725 = vmatpush2.msra.mxu0 %v527
        %726 = vmatprep.subr.mxu0 %v526
        %727 = vmatpush2.msra.mxu0 %v525
        %728 = vmatprep.subr.mxu0 %v524
        %729 = vmatpush2.msra.mxu0 %v523
        %730 = vmatprep.subr.mxu0 %v522
        %731 = vmatpush2.msra.mxu0 %v521
        %732 = vmatprep.subr.mxu0 %v520
        %733 = vmatpush2.msra.mxu0 %v519
        %734 = vmatprep.subr.mxu0 %v518
        %735 = vmatpush2.msra.mxu0 %v517
        %736 = vmatprep.subr.mxu0 %v516
        %737 = vmatpush2.msra.mxu0 %v515
        %738 = vmatprep.subr.mxu0 %v514
        %739 = vmatpush2.msra.mxu0 %v513
        %740 = vmatprep.subr.mxu0 %v512
        %741 = vmatpush2.msra.mxu0 %v511
        %742 = vmatprep.mubr.f32.mxu0 %v464
        %743 = vmatmul.mubr.f32.gmra.mxu0 %v463
        %v744 = vpop.f32.mrf.mxu0
        %v745 = vadd.f32 %v674, %v744
        %v746 = vpop.f32.mrf.mxu0
        %v747 = vadd.f32 %v676, %v746
        %748 = vdwg.mxu0
        %v749 = vxor.u32 %v745, 2147483648
        %v750 = vxor.u32 %v747, 2147483648
        %v751 = vmul.f32 %v749, 1.442695
        %v752 = vpow.pop %v751
        %v753 = vmul.f32 %v750, 1.442695
        %v754 = vpow.pop %v753
        %v755 = vadd.f32 %v752, 1.0
        %v756 = vadd.f32 %v754, 1.0
        %v757 = vrcp.pop %v755
        %v758 = vmul.f32 1.0, %v757
        %v759 = vrcp.pop %v756
        %v760 = vmul.f32 1.0, %v759
        %v761 = vlaneseq
        %v762 = vshrl.u32 %v761, 7
        %v763 = vsub.s32 0, %v762
        %v764 = vrot.slane %v758, %v763
        %v765 = vlaneseq
        %v766 = vshrl.u32 %v765, 7
        %v767 = vsub.s32 0, %v766
        %v768 = vrot.slane %v760, %v767
        %v769 = vmul.f32 %v444, %v764
        %v770 = vmul.f32 %v445, %v768
        %v771 = vmul.f32 %v446, %v764
        %v772 = vmul.f32 %v447, %v768
        %773 = vst [vmem:[%s205] sm:$0xff] %v769
        %774 = vst [vmem:[%s205 + $0x8] sm:$0xff] %v770
        %775 = vst [vmem:[%s205 + $0x10] sm:$0xff] %v771
        %776 = vst [vmem:[%s205 + $0x18] sm:$0xff] %v772
        %s777 = sand.u32 %s116, 1
        %s778 = scalar_lea.sflag [#allocation4], %s777
        %s779 = sand.u32 %s116, 1
        %s780 = smul.addr %s779, 32
        %s781 = scalar_lea.vmem [#allocation5], %s780
        // Predicated region
        $region41: #{tpu_custom_call.1} parent=35 // pred_check
          %p782 = pneg %p126
        $region42: #{tpu_custom_call.1} parent=35 // pred_check_branch
          %784 = sbr.rel (%p782) target = $region44
        $region43: #{tpu_custom_call.1} parent=35 // pred_region
          %s786 = ssub.s32 512, 512
          %787 = vsyncadd %s778, %s786
          %s788 = smul.addr %s19, 4
          %s789 = smul.addr %s788, 128
          %s790 = scalar_lea.hbm %s4, %s789
          %s791 = sshll.u32 %s781, 4
          %s792 = int_to_ptr.vmem [resolvable:$true] %s791
          %797 = dma.vmem_to_hbm [thread:$0]  %s792, 512, %s790, %s778, 256, 256, 16
        $region44: #{tpu_custom_call.1} parent=35 // pred_fallthru
          _
      $region36: #{tpu_custom_call.1} parent=5 // pred_fallthru
        _
      %p798 = scmp.le.s32.totalorder 2, %s14
      // Predicated region
      $region45: #{tpu_custom_call.1} parent=5 // pred_check
        %p799 = pneg %p798
      $region46: #{tpu_custom_call.1} parent=5 // pred_check_branch
        %801 = sbr.rel (%p799) target = $region48
      $region47: #{tpu_custom_call.1} parent=5 // pred_region
        %s802 = ssub.s32 %s14, 2
        // Predicated region
        $region49: #{tpu_custom_call.1} parent=47 // pred_check
          %p803 = pneg %p132
        $region50: #{tpu_custom_call.1} parent=47 // pred_check_branch
          %805 = sbr.rel (%p803) target = $region52
        $region51: #{tpu_custom_call.1} parent=47 // pred_region
          %s806 = sand.u32 %s117, 1
          %s807 = scalar_lea.sflag [#allocation4], %s806
          %s808 = sand.u32 %s117, 1
          %s809 = smul.addr %s808, 32
          %s810 = scalar_lea.vmem [#allocation5], %s809
          %811 = dma.done %s807, 512
        $region52: #{tpu_custom_call.1} parent=47 // pred_fallthru
          _
      $region48: #{tpu_custom_call.1} parent=5 // pred_fallthru
        _
    $region6: #{tpu_custom_call.1} parent=1 // loop_footer
      %s18 = sadd.s32 1, %s14
    $region7: #{tpu_custom_call.1} parent=1 // loop_footer_branch
      %13 = sbr.rel target = $region3
    $region8: #{tpu_custom_call.1} parent=1 // loop_exit
      _
    %812 = vsyncpa [#allocation3], 1
    %s813 = scalar_lea.sflag [#allocation3], 1
    %814 = vsyncpa %s813, 1
    %815 = vsyncpa [#allocation4], 1
    %s816 = scalar_lea.sflag [#allocation4], 1
    %817 = vsyncpa %s816, 1

</llo_original>
